<compile_context>
chip_gen: v6e
topology: v6e:2x2x1
jax: 0.10.0
libtpu: 0.0.40
codegen_flags: <defaults>
</compile_context>

<pallas_src>
import functools

import jax
import jax.numpy as jnp
from jax import lax
from jax.experimental import pallas as pl
from jax.experimental.pallas import tpu as pltpu


# ----------------------------------------------------------------------------
# Kernel 1: K/V projection (runs once, independent of query tiles).
#   K is emitted transposed as (hidden, N_k) so the attention kernel never has
#   to transpose K per head / per q-tile; V stays (N_k, hidden).
# ----------------------------------------------------------------------------
def kv_project_kernel(k_ref, wkT_ref, bkT_ref, wv_ref, bv_ref, kT_ref, v_ref):
    kn = k_ref[...].astype(jnp.bfloat16)
    # K^T[out, n] = sum_in W_K[out, in] * key[n, in]  (rhs-contracted dot, no
    # explicit transpose op; W_K passed in (out, in) layout from the wrapper).
    kT = lax.dot_general(wkT_ref[...], kn,
                         dimension_numbers=(((1,), (1,)), ((), ())),
                         preferred_element_type=jnp.float32) + bkT_ref[...]
    kT_ref[...] = kT.astype(kT_ref.dtype)

    v = jnp.dot(kn, wv_ref[...], preferred_element_type=jnp.float32) + bv_ref[...]
    v_ref[...] = v.astype(v_ref.dtype)


# ----------------------------------------------------------------------------
# Kernel 2: per-q-tile cross attention (grid over N_q tiles, fully parallel).
# ----------------------------------------------------------------------------
def cross_attention_kernel(q_ref, wq_ref, bq_ref, kT_ref, v_ref, o_ref,
                           *, num_heads: int, head_dim: int, inv_scale: float):
    # Q projection in bf16 on the MXU, f32 accumulation; fold 1/sqrt(head_dim)
    # into Q once (one (tile_q, hidden) VPU multiply).
    qn = q_ref[...].astype(jnp.bfloat16)
    q_proj = (jnp.dot(qn, wq_ref[...], preferred_element_type=jnp.float32)
              + bq_ref[...]) * inv_scale
    q_bf = q_proj.astype(jnp.bfloat16)

    # TODO(synk): for large num_heads / 128-aligned head_dim, replace this
    # unrolled loop with a batched dot_general (or lax.fori_loop with pl.ds
    # lane offsets) and pad head_dim to a multiple of 128 for full MXU width.
    head_outs = []
    for h in range(num_heads):
        lo = h * head_dim
        hi = lo + head_dim
        qh = q_bf[:, lo:hi]                   # (tile_q, head_dim) bf16
        khT = kT_ref[lo:hi, :]                # (head_dim, N_k)    bf16 (no transpose)
        vh = v_ref[:, lo:hi]                  # (N_k, head_dim)    bf16

        scores = jnp.dot(qh, khT, preferred_element_type=jnp.float32)  # (tile_q, N_k) f32

        # Softmax statistics in f32.
        m = jnp.max(scores, axis=-1, keepdims=True)
        p = jnp.exp(scores - m)
        denom = jnp.sum(p, axis=-1, keepdims=True)

        # PV matmul in bf16, then normalize the SMALL (tile_q, head_dim) result
        # (normalize-after-PV: N_k/head_dim fewer elementwise multiplies).
        o_h = jnp.dot(p.astype(jnp.bfloat16), vh, preferred_element_type=jnp.float32)
        head_outs.append(o_h * pl.reciprocal(denom, approx=True))  # EUP slot

    # Single lane-dense store of the full (tile_q, hidden) result.
    o_ref[...] = jnp.concatenate(head_outs, axis=-1).astype(o_ref.dtype)


# ----------------------------------------------------------------------------
# Wrapper
# ----------------------------------------------------------------------------
def _vmem_limit_bytes(n_k, hidden, tile_q, num_heads):
    # Residents (bf16 weights + bf16 K^T/V), counted twice for default
    # double-buffering, plus double-buffered f32 q/out tiles, plus per-head
    # f32 score/prob temporaries, plus headroom.
    resident = hidden * hidden * 2 + hidden * 4 + 2 * (n_k * hidden * 2)
    tiles = 2 * 2 * tile_q * hidden * 4
    tmps = 4 * tile_q * n_k * 4 + 2 * tile_q * hidden * 4
    est = 2 * resident + tiles + tmps + (2 << 20)
    # Floor keeps small configs at a safe default; cap stays under every
    # generation's physical VMEM (v7x = 64 MiB per TensorCore).
    return int(min(60 << 20, max(est, 32 << 20)))


def cross_attention(query_nodes, key_nodes, params, *, num_heads: int,
                    tile_q: int | None = None):
    wq, bq, wk, bk, wv, bv = params
    n_q, hidden = query_nodes.shape
    n_k = key_nodes.shape[0]
    head_dim = hidden // num_heads
    assert head_dim * num_heads == hidden
    inv_scale = 1.0 / (float(head_dim) ** 0.5)

    # bf16 weights for the MXU (one-time parameter cast); biases stay f32.
    wq_bf = wq.astype(jnp.bfloat16)
    wkT_bf = wk.T.astype(jnp.bfloat16)        # (out, in) layout for the K^T kernel
    wv_bf = wv.astype(jnp.bfloat16)
    bkT = bk.reshape(hidden, 1)               # bias broadcast along the N_k lanes

    # --- Stage 1: project K (transposed) and V once, in bf16. -----------------
    # TODO(synk): tile this over N_k (and add online softmax in stage 2) when
    # n_k * hidden no longer fits comfortably in VMEM.
    k_t, v_proj = pl.pallas_call(
        kv_project_kernel,
        out_shape=(jax.ShapeDtypeStruct((hidden, n_k), jnp.bfloat16),
                   jax.ShapeDtypeStruct((n_k, hidden), jnp.bfloat16)),
    )(key_nodes, wkT_bf, bkT, wv_bf, bv)

    # --- Stage 2: attention, gridded over query tiles (parallel axis). --------
    if tile_q is None:
        tile_q = n_q if n_q <= 256 else 256
    if tile_q != n_q:
        assert tile_q % 8 == 0, "tile_q must be a multiple of 8 (or == N_q)"
    grid = (pl.cdiv(n_q, tile_q),)

    kernel = functools.partial(
        cross_attention_kernel,
        num_heads=num_heads, head_dim=head_dim, inv_scale=inv_scale)

    def const(shape):
        # Grid-invariant (resident) operand.
        # TODO(synk): single-buffer these with pipeline_mode=pl.Buffered(1) once
        # verified on the target jax version; saves ~1x of each resident block.
        return pl.BlockSpec(shape, lambda i: (0, 0))

    return pl.pallas_call(
        kernel,
        out_shape=jax.ShapeDtypeStruct((n_q, hidden), jnp.float32),
        grid=grid,
        in_specs=[
            pl.BlockSpec((tile_q, hidden), lambda i: (i, 0)),  # query tile
            const((hidden, hidden)),       # W_Q (bf16, resident)
            const((1, hidden)),            # b_Q (f32)
            const((hidden, n_k)),          # K^T (bf16, resident)
            const((n_k, hidden)),          # V   (bf16, resident)
        ],
        out_specs=pl.BlockSpec((tile_q, hidden), lambda i: (i, 0)),
        compiler_params=pltpu.CompilerParams(
            dimension_semantics=("parallel",),
            vmem_limit_bytes=_vmem_limit_bytes(n_k, hidden, tile_q, num_heads)),
    )(query_nodes, wq_bf, bq, k_t, v_proj)


# ----------------------------------------------------------------------------
# Init + pure-JAX reference (replicates the PyTorch forward in f32)
# ----------------------------------------------------------------------------
def init_params(key, hidden_dim):
    bound = 1.0 / (hidden_dim ** 0.5)
    ks = jax.random.split(key, 6)

    def lin(kw, kb):
        # Stored pre-transposed: (in, out) so kernels compute x @ W + b.
        w = jax.random.uniform(kw, (hidden_dim, hidden_dim), jnp.float32, -bound, bound)
        b = jax.random.uniform(kb, (1, hidden_dim), jnp.float32, -bound, bound)
        return w, b

    wq, bq = lin(ks[0], ks[1])
    wk, bk = lin(ks[2], ks[3])
    wv, bv = lin(ks[4], ks[5])
    return (wq, bq, wk, bk, wv, bv)


def reference(query_nodes, key_nodes, params, *, num_heads: int):
    wq, bq, wk, bk, wv, bv = params
    n_q, hidden = query_nodes.shape
    n_k = key_nodes.shape[0]
    head_dim = hidden // num_heads
    scale = float(head_dim) ** 0.5

    Q = (query_nodes @ wq + bq).reshape(n_q, num_heads, head_dim).transpose(1, 0, 2)
    K = (key_nodes @ wk + bk).reshape(n_k, num_heads, head_dim).transpose(1, 0, 2)
    V = (key_nodes @ wv + bv).reshape(n_k, num_heads, head_dim).transpose(1, 0, 2)
    scores = jnp.einsum('hqd,hkd->hqk', Q, K) / scale
    w = jax.nn.softmax(scores, axis=-1)
    out = jnp.einsum('hqk,hkd->hqd', w, V).transpose(1, 0, 2).reshape(n_q, hidden)
    return out


if __name__ == "__main__":
    hidden_dim = 32
    num_heads = 4
    n_q, n_k = 16, 8

    key = jax.random.PRNGKey(0)
    k_q, k_k, k_p = jax.random.split(key, 3)
    query_nodes = jax.random.normal(k_q, (n_q, hidden_dim), jnp.float32)
    key_nodes = jax.random.normal(k_k, (n_k, hidden_dim), jnp.float32)
    params = init_params(k_p, hidden_dim)

    # tile_q=8 exercises the multi-tile (parallel) grid path: 2 q-tiles sharing
    # the resident bf16 K^T / V produced by the projection kernel.
    out = cross_attention(query_nodes, key_nodes, params,
                          num_heads=num_heads, tile_q=8)
    out = jax.block_until_ready(out)

    ref = reference(query_nodes, key_nodes, params, num_heads=num_heads)
    assert out.shape == (n_q, hidden_dim)
    # Tolerance covers bf16 MXU operands (+ approx reciprocal) vs the f32 reference.
    assert jnp.allclose(out, ref, atol=2e-2, rtol=2e-2), "mismatch vs reference"

    print("KERNEL_OK")
</pallas_src>

<mosaic_0001>
module attributes {stable_mosaic.version = 11 : i64} {
  func.func @kv_project_kernel(%arg0: memref<8x32xf32, #tpu.memory_space<vmem>>, %arg1: memref<32x32xbf16, #tpu.memory_space<vmem>>, %arg2: memref<32x1xf32, #tpu.memory_space<vmem>>, %arg3: memref<32x32xbf16, #tpu.memory_space<vmem>>, %arg4: memref<1x32xf32, #tpu.memory_space<vmem>>, %arg5: memref<32x8xbf16, #tpu.memory_space<vmem>>, %arg6: memref<8x32xbf16, #tpu.memory_space<vmem>>) attributes {dimension_semantics = [], scalar_prefetch = 0 : i64, scratch_operands = 0 : i64, tpu.core_type = #tpu.core_type<tc>} {
    %c0 = arith.constant 0 : index
    %c0_0 = arith.constant 0 : index
    %0 = vector.load %arg0[%c0, %c0_0] : memref<8x32xf32, #tpu.memory_space<vmem>>, vector<8x32xf32>
    %1 = arith.truncf %0 : vector<8x32xf32> to vector<8x32xbf16>
    %c0_1 = arith.constant 0 : index
    %c0_2 = arith.constant 0 : index
    %2 = vector.load %arg1[%c0_1, %c0_2] : memref<32x32xbf16, #tpu.memory_space<vmem>>, vector<32x32xbf16>
    %cst = arith.constant dense<0.000000e+00> : vector<32x8xf32>
    %3 = tpu.matmul %2, %1, %cst {dimension_numbers = #tpu.dot_dimension_numbers<[1], [1], [0], [0], [0, 0, 1, 0], [], []>} : vector<32x32xbf16>, vector<8x32xbf16>, vector<32x8xf32> -> vector<32x8xf32>
    %c0_3 = arith.constant 0 : index
    %c0_4 = arith.constant 0 : index
    %4 = vector.load %arg2[%c0_3, %c0_4] : memref<32x1xf32, #tpu.memory_space<vmem>>, vector<32x1xf32>
    %5 = vector.broadcast %4 : vector<32x1xf32> to vector<32x8xf32>
    %6 = arith.addf %3, %5 : vector<32x8xf32>
    %7 = arith.truncf %6 : vector<32x8xf32> to vector<32x8xbf16>
    %c0_5 = arith.constant 0 : index
    %c0_6 = arith.constant 0 : index
    %8 = vector.load %arg5[%c0_5, %c0_6] : memref<32x8xbf16, #tpu.memory_space<vmem>>, vector<32x8xbf16>
    tpu.vector_store %arg5[%c0_5, %c0_6], %7 {strides = array<i32>} : memref<32x8xbf16, #tpu.memory_space<vmem>>, vector<32x8xbf16>,
    %c0_7 = arith.constant 0 : index
    %c0_8 = arith.constant 0 : index
    %9 = vector.load %arg3[%c0_7, %c0_8] : memref<32x32xbf16, #tpu.memory_space<vmem>>, vector<32x32xbf16>
    %cst_9 = arith.constant dense<0.000000e+00> : vector<8x32xf32>
    %10 = tpu.matmul %1, %9, %cst_9 {dimension_numbers = #tpu.dot_dimension_numbers<[1], [0], [0], [1], [0, 0, 1, 1], [], []>} : vector<8x32xbf16>, vector<32x32xbf16>, vector<8x32xf32> -> vector<8x32xf32>
    %c0_10 = arith.constant 0 : index
    %c0_11 = arith.constant 0 : index
    %11 = vector.load %arg4[%c0_10, %c0_11] : memref<1x32xf32, #tpu.memory_space<vmem>>, vector<1x32xf32>
    %12 = vector.broadcast %11 : vector<1x32xf32> to vector<8x32xf32>
    %13 = arith.addf %10, %12 : vector<8x32xf32>
    %14 = arith.truncf %13 : vector<8x32xf32> to vector<8x32xbf16>
    %c0_12 = arith.constant 0 : index
    %c0_13 = arith.constant 0 : index
    %15 = vector.load %arg6[%c0_12, %c0_13] : memref<8x32xbf16, #tpu.memory_space<vmem>>, vector<8x32xbf16>
    tpu.vector_store %arg6[%c0_12, %c0_13], %14 {strides = array<i32>} : memref<8x32xbf16, #tpu.memory_space<vmem>>, vector<8x32xbf16>,
    return
  }
}

</mosaic_0001>

<llo_original>
// kernel: tpu_custom_call.1
$region0: #{tpu_custom_call.1}
  #allocation0 [shape = 'u32[]', space=smem, size = 0x4, offset = 0x4, fixed_abs, tag = 'smem constant byte address 0x4 - core index']
  #allocation1 [shape = 'u32[144,128]{1,0:T(1,128)}', space=vmem, size = 0x12000, scoped, tag = 'internal scratch']
  %s0 = inlined_call_operand.hbm [shape: f32[8,32], index: 0, kind: input, shape index: {}]
  %s1 = inlined_call_operand.vmem [shape: bf16[32,32], index: 1, kind: input, shape index: {}]
  %s2 = inlined_call_operand.vmem [shape: f32[32,1], index: 2, kind: input, shape index: {}]
  %s3 = inlined_call_operand.vmem [shape: bf16[32,32], index: 3, kind: input, shape index: {}]
  %s4 = inlined_call_operand.vmem [shape: f32[1,32], index: 4, kind: input, shape index: {}]
  %s5 = inlined_call_operand.vmem [shape: bf16[32,8], index: 5, kind: output, shape index: {0}]
  %s6 = inlined_call_operand.hbm [shape: bf16[8,32], index: 6, kind: output, shape index: {1}]
  %7 = xla_tuple %s5, %s6
  %s8 = sld [smem:[#allocation0]]
  $region42: #{tpu_custom_call.1} parent=0
    _
  %s10 = ssub.s32 1, %s8
  %s11 = scalar_select 0, %s10, %s8
  $region1: #{tpu_custom_call.1} parent=0
    #allocation2 [shape = 'u8[4096]{0}', space=vmem, size = 0x1000, scoped, tag = 'input window, operand 0, single buffered']
    #allocation3 [shape = 's32[1]{0}', space=sflag, size = 0x4, scoped, tag = 'scoped memory for tpu_custom_call.1']
    #allocation4 [shape = 's32[1]{0}', space=sflag, size = 0x4, scoped, tag = 'scoped memory for tpu_custom_call.1']
    #allocation5 [shape = 'u8[2048]{0}', space=vmem, size = 0x800, scoped, tag = 'output window, operand 1, single buffered']
    %12 = vsyncpa [#allocation3], 0
    %13 = vsyncpa [#allocation4], 0
    // Predicated region
    $region2: #{tpu_custom_call.1} parent=1 // pred_check
      _
    $region3: #{tpu_custom_call.1} parent=1 // pred_check_branch
      %15 = sbr.rel (0) target = $region5
    $region4: #{tpu_custom_call.1} parent=1 // pred_region
      %s17 = ssub.s32 128, 128
      %18 = vsyncadd [#allocation3], %s17
      %s20 = sshll.u32 [#allocation2], 4
      %s21 = int_to_ptr.vmem [resolvable:$true] %s20
      %23 = dma.hbm_to_vmem [thread:$0]  %s0, 128, %s21, [#allocation3]
    $region5: #{tpu_custom_call.1} parent=1 // pred_fallthru
      _
    // Predicated region
    $region6: #{tpu_custom_call.1} parent=1 // pred_check
      _
    $region7: #{tpu_custom_call.1} parent=1 // pred_check_branch
      %25 = sbr.rel (0) target = $region9
    $region8: #{tpu_custom_call.1} parent=1 // pred_region
      _
    $region9: #{tpu_custom_call.1} parent=1 // pred_fallthru
      _
    // Predicated region
    $region10: #{tpu_custom_call.1} parent=1 // pred_check
      _
    $region11: #{tpu_custom_call.1} parent=1 // pred_check_branch
      %27 = sbr.rel (0) target = $region13
    $region12: #{tpu_custom_call.1} parent=1 // pred_region
      _
    $region13: #{tpu_custom_call.1} parent=1 // pred_fallthru
      _
    // Predicated region
    $region14: #{tpu_custom_call.1} parent=1 // pred_check
      _
    $region15: #{tpu_custom_call.1} parent=1 // pred_check_branch
      %29 = sbr.rel (0) target = $region17
    $region16: #{tpu_custom_call.1} parent=1 // pred_region
      _
    $region17: #{tpu_custom_call.1} parent=1 // pred_fallthru
      _
    // Predicated region
    $region18: #{tpu_custom_call.1} parent=1 // pred_check
      _
    $region19: #{tpu_custom_call.1} parent=1 // pred_check_branch
      %31 = sbr.rel (0) target = $region21
    $region20: #{tpu_custom_call.1} parent=1 // pred_region
      _
    $region21: #{tpu_custom_call.1} parent=1 // pred_fallthru
      _
    // Predicated region
    $region22: #{tpu_custom_call.1} parent=1 // pred_check
      _
    $region23: #{tpu_custom_call.1} parent=1 // pred_check_branch
      %33 = sbr.rel (0) target = $region25
    $region24: #{tpu_custom_call.1} parent=1 // pred_region
      %34 = dma.done [#allocation3], 128
    $region25: #{tpu_custom_call.1} parent=1 // pred_fallthru
      _
    %v36 = vld [vmem:[#allocation2] sm:$0xff]
    %v37 = vpack.c.bf16 %v36, %v36
    %v38 = vld [vmem:[%s1] sm:$0xf]
    %v39 = vld [vmem:[%s1 + $0x4] sm:$0xf]
    %v40 = vld [vmem:[%s1 + $0x8] sm:$0xf]
    %v41 = vld [vmem:[%s1 + $0xc] sm:$0xf]
    %v42 = vld [vmem:[%s2] sm:$0xff]
    %v43 = vld [vmem:[%s2 + $0x8] sm:$0xff]
    %v44 = vld [vmem:[%s2 + $0x10] sm:$0xff]
    %v45 = vld [vmem:[%s2 + $0x18] sm:$0xff]
    %47 = vset.pattern.permute.xlu0 0
    %48 = vperm.xlu0 %47, %v42
    %v49 = vpop.permute.xlu0 %48
    %52 = vset.pattern.permute.xlu0 0
    %53 = vperm.xlu0 %52, %v43
    %v54 = vpop.permute.xlu0 %53
    %57 = vset.pattern.permute.xlu0 0
    %58 = vperm.xlu0 %57, %v44
    %v59 = vpop.permute.xlu0 %58
    %62 = vset.pattern.permute.xlu0 0
    %63 = vperm.xlu0 %62, %v45
    %v64 = vpop.permute.xlu0 %63
    %v70 = vunpack.c.l.b16 %v38
    %v71 = vunpack.c.l.b16 %v39
    %v72 = vunpack.c.l.b16 %v40
    %v73 = vunpack.c.l.b16 %v41
    %v74 = vpack.c.b16 %v71, %v70
    %v75 = vpack.c.b16 %v73, %v72
    %vm76 = vcmask 261120
    %v78 = vsel %vm76, %v74, 0
    %v81 = vsel %vm76, %v75, 0
    %v84 = vsel %vm76, %v37, 0
    %86 = vmatprep.subr.bf16.mxu0 0
    %87 = vmatpush1.bf16.xpose.msra.mxu0 0
    %88 = vmatprep.subr.bf16.mxu0 0
    %89 = vmatpush1.bf16.xpose.msra.mxu0 0
    %90 = vmatprep.subr.bf16.mxu0 0
    %91 = vmatpush1.bf16.xpose.msra.mxu0 0
    %92 = vmatprep.subr.bf16.mxu0 0
    %93 = vmatpush1.bf16.xpose.msra.mxu0 0
    %94 = vmatprep.subr.bf16.mxu0 0
    %95 = vmatpush1.bf16.xpose.msra.mxu0 0
    %96 = vmatprep.subr.bf16.mxu0 0
    %97 = vmatpush1.bf16.xpose.msra.mxu0 0
    %98 = vmatprep.subr.bf16.mxu0 0
    %99 = vmatpush1.bf16.xpose.msra.mxu0 0
    %100 = vmatprep.subr.bf16.mxu0 0
    %101 = vmatpush1.bf16.xpose.msra.mxu0 %v84
    %102 = vmatprep.subr.bf16.mxu0 0
    %103 = vmatpush2.bf16.xpose.msra.mxu0 0
    %104 = vmatprep.subr.bf16.mxu0 0
    %105 = vmatpush2.bf16.xpose.msra.mxu0 0
    %106 = vmatprep.subr.bf16.mxu0 0
    %107 = vmatpush2.bf16.xpose.msra.mxu0 0
    %108 = vmatprep.subr.bf16.mxu0 0
    %109 = vmatpush2.bf16.xpose.msra.mxu0 0
    %110 = vmatprep.subr.bf16.mxu0 0
    %111 = vmatpush2.bf16.xpose.msra.mxu0 0
    %112 = vmatprep.subr.bf16.mxu0 0
    %113 = vmatpush2.bf16.xpose.msra.mxu0 0
    %114 = vmatprep.subr.bf16.mxu0 0
    %115 = vmatpush2.bf16.xpose.msra.mxu0 0
    %116 = vmatprep.subr.bf16.mxu0 0
    %117 = vmatpush2.bf16.xpose.msra.mxu0 0
    %118 = vmatprep.mubr.bf16.mxu0 0
    %119 = vmatmul.mubr.bf16.gmra.mxu0 %v78
    %v120 = vpop.f32.mrf.mxu0
    %v121 = vadd.f32 %v49, %v120
    %v122 = vpop.f32.mrf.mxu0
    %v123 = vpop.f32.mrf.mxu0
    %v124 = vadd.f32 %v54, %v123
    %v125 = vpop.f32.mrf.mxu0
    %126 = vmatprep.mubr.bf16.mxu0 0
    %127 = vmatmul.mubr.bf16.gmra.mxu0 %v81
    %v128 = vpop.f32.mrf.mxu0
    %v129 = vadd.f32 %v59, %v128
    %v130 = vpop.f32.mrf.mxu0
    %v131 = vpop.f32.mrf.mxu0
    %v132 = vadd.f32 %v64, %v131
    %v133 = vpop.f32.mrf.mxu0
    %134 = vdwg.mxu0
    %v135 = vpack.c.bf16 %v124, %v121
    %v136 = vpack.c.bf16 %v132, %v129
    %v139 = vunpack.c.l.b16 %v135
    %v140 = vunpack.c.h.b16 %v135
    %v141 = vunpack.c.l.b16 %v136
    %v142 = vunpack.c.h.b16 %v136
    %v143 = vpack.c.b16 %v139, %v139
    %v144 = vpack.c.b16 %v140, %v140
    %v145 = vpack.c.b16 %v141, %v141
    %v146 = vpack.c.b16 %v142, %v142
    %vm151 = vcmask 60416
    %152 = vst.msk [vmem:[%s5] sm:$0xf] %vm151, %v143
    %153 = vst.msk [vmem:[%s5 + $0x4] sm:$0xf] %vm151, %v144
    %154 = vst.msk [vmem:[%s5 + $0x8] sm:$0xf] %vm151, %v145
    %155 = vst.msk [vmem:[%s5 + $0xc] sm:$0xf] %vm151, %v146
    %v156 = vld [vmem:[%s3] sm:$0xf]
    %v157 = vld [vmem:[%s3 + $0x4] sm:$0xf]
    %v158 = vld [vmem:[%s3 + $0x8] sm:$0xf]
    %v159 = vld [vmem:[%s3 + $0xc] sm:$0xf]
    %v160 = vld [vmem:[%s4] sm:$0x1]
    %v162 = vlaneseq
    %v163 = vshrl.u32 %v162, 7
    %v164 = vsub.s32 0, %v163
    %v165 = vrot.slane %v160, %v164
    %v171 = vunpack.c.l.b16 %v156
    %v172 = vunpack.c.l.b16 %v157
    %v173 = vunpack.c.l.b16 %v158
    %v174 = vunpack.c.l.b16 %v159
    %v175 = vpack.c.b16 %v172, %v171
    %v176 = vpack.c.b16 %v174, %v173
    %179 = vmatprep.subr.bf16.mxu0 0
    %180 = vmatpush1.bf16.msra.mxu0 0
    %181 = vmatprep.subr.bf16.mxu0 0
    %182 = vmatpush1.bf16.msra.mxu0 0
    %183 = vmatprep.subr.bf16.mxu0 0
    %184 = vmatpush1.bf16.msra.mxu0 0
    %185 = vmatprep.subr.bf16.mxu0 0
    %186 = vmatpush1.bf16.msra.mxu0 0
    %187 = vmatprep.subr.bf16.mxu0 0
    %188 = vmatpush1.bf16.msra.mxu0 0
    %189 = vmatprep.subr.bf16.mxu0 0
    %190 = vmatpush1.bf16.msra.mxu0 0
    %191 = vmatprep.subr.bf16.mxu0 0
    %192 = vmatpush1.bf16.msra.mxu0 %v176
    %193 = vmatprep.subr.bf16.mxu0 0
    %194 = vmatpush1.bf16.msra.mxu0 %v175
    %195 = vmatprep.subr.bf16.mxu0 0
    %196 = vmatpush2.bf16.msra.mxu0 0
    %197 = vmatprep.subr.bf16.mxu0 0
    %198 = vmatpush2.bf16.msra.mxu0 0
    %199 = vmatprep.subr.bf16.mxu0 0
    %200 = vmatpush2.bf16.msra.mxu0 0
    %201 = vmatprep.subr.bf16.mxu0 0
    %202 = vmatpush2.bf16.msra.mxu0 0
    %203 = vmatprep.subr.bf16.mxu0 0
    %204 = vmatpush2.bf16.msra.mxu0 0
    %205 = vmatprep.subr.bf16.mxu0 0
    %206 = vmatpush2.bf16.msra.mxu0 0
    %207 = vmatprep.subr.bf16.mxu0 0
    %208 = vmatpush2.bf16.msra.mxu0 0
    %209 = vmatprep.subr.bf16.mxu0 0
    %210 = vmatpush2.bf16.msra.mxu0 0
    %211 = vmatprep.mubr.bf16.mxu0 0
    %212 = vmatmul.mubr.bf16.gmra.mxu0 %v84
    %v213 = vpop.f32.mrf.mxu0
    %v214 = vadd.f32 %v165, %v213
    %v215 = vpop.f32.mrf.mxu0
    %v216 = vpop.f32.mrf.mxu0
    %v217 = vpop.f32.mrf.mxu0
    %218 = vdwg.mxu0
    %v219 = vpack.c.bf16 %v214, %v214
    %vm220 = vcmask 257024
    %221 = vst.msk [vmem:[#allocation5] sm:$0xf] %vm220, %v219
    // Predicated region
    $region26: #{tpu_custom_call.1} parent=1 // pred_check
      _
    $region27: #{tpu_custom_call.1} parent=1 // pred_check_branch
      %223 = sbr.rel (0) target = $region29
    $region28: #{tpu_custom_call.1} parent=1 // pred_region
      _
    $region29: #{tpu_custom_call.1} parent=1 // pred_fallthru
      _
    // Predicated region
    $region30: #{tpu_custom_call.1} parent=1 // pred_check
      _
    $region31: #{tpu_custom_call.1} parent=1 // pred_check_branch
      %225 = sbr.rel (0) target = $region33
    $region32: #{tpu_custom_call.1} parent=1 // pred_region
      %s227 = ssub.s32 64, 64
      %228 = vsyncadd [#allocation4], %s227
      %s230 = sshll.u32 [#allocation5], 4
      %s231 = int_to_ptr.vmem [resolvable:$true] %s230
      %233 = dma.vmem_to_hbm [thread:$0]  %s231, 64, %s6, [#allocation4]
    $region33: #{tpu_custom_call.1} parent=1 // pred_fallthru
      _
    // Predicated region
    $region34: #{tpu_custom_call.1} parent=1 // pred_check
      _
    $region35: #{tpu_custom_call.1} parent=1 // pred_check_branch
      %235 = sbr.rel (0) target = $region37
    $region36: #{tpu_custom_call.1} parent=1 // pred_region
      _
    $region37: #{tpu_custom_call.1} parent=1 // pred_fallthru
      _
    // Predicated region
    $region38: #{tpu_custom_call.1} parent=1 // pred_check
      _
    $region39: #{tpu_custom_call.1} parent=1 // pred_check_branch
      %237 = sbr.rel (0) target = $region41
    $region40: #{tpu_custom_call.1} parent=1 // pred_region
      %238 = dma.done [#allocation4], 64
    $region41: #{tpu_custom_call.1} parent=1 // pred_fallthru
      _
    %239 = vsyncpa [#allocation3], 1
    %240 = vsyncpa [#allocation4], 1

</llo_original>
